<compile_context>
chip_gen: v7x
topology: tpu7x:2x2x1
jax: 0.10.0
libtpu: 0.0.40
codegen_flags: <defaults>
</compile_context>

<pallas_src>
import functools

import jax
import jax.numpy as jnp
from jax import lax
from jax.experimental import pallas as pl
from jax.experimental.pallas import tpu as pltpu


def _round_up(x, m):
    return ((x + m - 1) // m) * m


def _cdiv(a, b):
    return (a + b - 1) // b


def _mlp_kernel(x_ref, w1_ref, b1_ref, w2_ref, b2_ref, w3_ref, b3_ref,
                w4_ref, b4_ref, o_ref, *, matmul_dtype, ew_dtype):
    """Fused 4-layer MLP on one (TM, D) batch tile.

    The tile arrives in its native (TM, D) layout; the first matmul contracts D-vs-D so
    the hidden activations are feature-major (H, TM) with the batch mapped to lanes.
    """
    x = x_ref[...].astype(matmul_dtype)                                    # (TM, D)

    # Layer 1: (H, D) x (TM, D) contracted on D -> (H, TM), f32 accumulation on the MXU.
    h = lax.dot_general(w1_ref[...], x, (((1,), (1,)), ((), ())),
                        preferred_element_type=jnp.float32)
    h = jnp.tanh((h + b1_ref[...]).astype(ew_dtype)).astype(matmul_dtype)

    # Layers 2 / 3: (H, H) @ (H, TM) -> (H, TM).
    h = jnp.dot(w2_ref[...], h, preferred_element_type=jnp.float32)
    h = jnp.tanh((h + b2_ref[...]).astype(ew_dtype)).astype(matmul_dtype)

    h = jnp.dot(w3_ref[...], h, preferred_element_type=jnp.float32)
    h = jnp.tanh((h + b3_ref[...]).astype(ew_dtype))

    # Final (H -> 1): VPU multiply + sublane reduce in f32, lane-dense (1, TM) store.
    out_row = jnp.sum(h.astype(jnp.float32) * w4_ref[...], axis=0, keepdims=True)
    out_row = out_row + b4_ref[0, 0]
    o_ref[...] = out_row.astype(o_ref.dtype)


def _default_ew_dtype():
    """bf16 elementwise/tanh on generations with a bf16 VPU/EUP (v6e, v7x); f32 otherwise."""
    try:
        kind = jax.devices()[0].device_kind.lower()
    except Exception:
        return jnp.float32
    if any(tag in kind for tag in ("v6", "v7", "7x")):
        return jnp.bfloat16
    return jnp.float32


def terminal_network_forward(x, params, *, block_batch=32768,
                             matmul_dtype=jnp.bfloat16, ew_dtype=None):
    """Forward pass of the terminal-prediction MLP.

    x: (B, input_dim) float32.
    params (PyTorch layout):
        W1 (H, D), b1 (H,), W2 (H, H), b2 (H,), W3 (H, H), b3 (H,), W4 (1, H), b4 (1,)
    Returns: (B, 1) float32, same semantics as the nn.Module forward.
    """
    w1, b1, w2, b2, w3, b3, w4, b4 = params
    B, D = x.shape
    H = w1.shape[0]

    if ew_dtype is None:
        ew_dtype = _default_ew_dtype()

    # Tiny batches: pad to one full 128-lane tile (cheap copy of a tiny array).
    # Larger batches are consumed in place with a partial last block -- no extra
    # wrapper-side HBM pass over x.
    if B < 128:
        x_in = jnp.pad(x, ((0, 128 - B), (0, 0)))
        b_eff = 128
    else:
        x_in = x
        b_eff = B

    # Batch tile (multiple of 128 lanes):
    #  * large by default to amortize per-grid-step overhead,
    #  * capped at ~half the batch so the grid has >= 2 steps (both v7x TCs busy),
    #  * capped so a few (H, tm) f32 activation slabs + double-buffered x fit VMEM.
    b128 = _round_up(b_eff, 128)
    half = _round_up(_cdiv(b128, 2), 128)
    vmem_budget = 20 * 1024 * 1024
    per_col_bytes = 16 * H + 8 * D
    vmem_cap = max(128, (vmem_budget // per_col_bytes) // 128 * 128)
    tm = max(128, min(_round_up(block_batch, 128), half, vmem_cap))

    grid_len = _cdiv(b_eff, tm)
    n_out = grid_len * tm

    # Kernel-friendly parameter shapes/dtypes (tiny, once per call).
    w1c = w1.astype(matmul_dtype)
    w2c = w2.astype(matmul_dtype)
    w3c = w3.astype(matmul_dtype)
    b1c = b1.reshape(H, 1).astype(jnp.float32)
    b2c = b2.reshape(H, 1).astype(jnp.float32)
    b3c = b3.reshape(H, 1).astype(jnp.float32)
    w4c = w4.reshape(H, 1).astype(jnp.float32)    # (1, H) -> (H, 1), VPU operand
    b4c = b4.reshape(1, 1).astype(jnp.float32)

    def resident(shape):
        # Full-block spec with constant index_map: loaded once, stays in VMEM.
        return pl.BlockSpec(shape, lambda i: (0, 0))

    kernel = functools.partial(_mlp_kernel, matmul_dtype=matmul_dtype, ew_dtype=ew_dtype)

    out = pl.pallas_call(
        kernel,
        out_shape=jax.ShapeDtypeStruct((1, n_out), jnp.float32),
        grid=(grid_len,),
        in_specs=[
            pl.BlockSpec((tm, D), lambda i: (i, 0)),          # x tile (pipelined, native layout)
            resident((H, D)),                                 # W1
            resident((H, 1)),                                 # b1
            resident((H, H)),                                 # W2
            resident((H, 1)),                                 # b2
            resident((H, H)),                                 # W3
            resident((H, 1)),                                 # b3
            resident((H, 1)),                                 # W4^T (VPU operand)
            pl.BlockSpec(memory_space=pltpu.SMEM),            # b4 scalar
        ],
        out_specs=pl.BlockSpec((1, tm), lambda i: (0, i)),
        compiler_params=pltpu.CompilerParams(
            dimension_semantics=("parallel",)),               # megacore sharding on v7x
    )(x_in, w1c, b1c, w2c, b2c, w3c, b3c, w4c, b4c)

    # Lane-dense (1, n_out) slab -> (B, 1), matching the PyTorch module.
    return out.reshape(n_out, 1)[:B]


def init_params(key, input_dim, hidden_dim):
    """PyTorch-layout init mimicking nn.Linear defaults (uniform +/- 1/sqrt(fan_in))."""
    dims = [(input_dim, hidden_dim),
            (hidden_dim, hidden_dim),
            (hidden_dim, hidden_dim),
            (hidden_dim, 1)]
    params = []
    for fan_in, fan_out in dims:
        key, kw, kb = jax.random.split(key, 3)
        bound = 1.0 / jnp.sqrt(jnp.float32(fan_in))
        w = jax.random.uniform(kw, (fan_out, fan_in), jnp.float32, -bound, bound)
        b = jax.random.uniform(kb, (fan_out,), jnp.float32, -bound, bound)
        params.extend([w, b])
    return tuple(params)


def reference_forward(x, params):
    w1, b1, w2, b2, w3, b3, w4, b4 = params
    h = jnp.tanh(x @ w1.T + b1)
    h = jnp.tanh(h @ w2.T + b2)
    h = jnp.tanh(h @ w3.T + b3)
    return h @ w4.T + b4


# TODO(synk): the optimizer (TP_OPTIM) / loss (TP_LOSS_F) training machinery of the
# original module is out of scope for a forward-pass kernel and is not implemented.

if __name__ == "__main__":
    key = jax.random.PRNGKey(0)
    batch = 8
    input_dim = 16     # "input_dim" constructor arg
    hidden_dim = 32    # config['hidden_dim']

    key, kx, kp = jax.random.split(key, 3)
    x = jax.random.normal(kx, (batch, input_dim), jnp.float32)
    params = init_params(kp, input_dim, hidden_dim)
    ref = reference_forward(x, params)

    # Exact-precision path (f32 matmuls / tanh) -- tight validation of the kernel math.
    fwd_f32 = jax.jit(functools.partial(terminal_network_forward,
                                        matmul_dtype=jnp.float32,
                                        ew_dtype=jnp.float32))
    out_f32 = jax.block_until_ready(fwd_f32(x, params))
    assert out_f32.shape == (batch, 1)
    assert jnp.allclose(out_f32, ref, atol=1e-5, rtol=1e-5)

    # Default fast path: bf16 MXU operands, f32 accumulation (looser tolerance vs f32 ref).
    fwd = jax.jit(terminal_network_forward)
    out = jax.block_until_ready(fwd(x, params))
    assert out.shape == (batch, 1)
    assert jnp.allclose(out, ref, atol=3e-2, rtol=3e-2)

    # Ragged batch spanning multiple grid steps (partial last-block path).
    key, kx2 = jax.random.split(key)
    x2 = jax.random.normal(kx2, (200, input_dim), jnp.float32)
    ref2 = reference_forward(x2, params)
    fwd_small_tile = jax.jit(functools.partial(terminal_network_forward, block_batch=128))
    out2 = jax.block_until_ready(fwd_small_tile(x2, params))
    assert out2.shape == (200, 1)
    assert jnp.allclose(out2, ref2, atol=3e-2, rtol=3e-2)

    print("KERNEL_OK")
</pallas_src>

<mosaic_0001>
module attributes {stable_mosaic.version = 11 : i64} {
  func.func @_mlp_kernel(%arg0: i32, %arg1: memref<128x16xf32, #tpu.memory_space<vmem>>, %arg2: memref<32x16xf32, #tpu.memory_space<vmem>>, %arg3: memref<32x1xf32, #tpu.memory_space<vmem>>, %arg4: memref<32x32xf32, #tpu.memory_space<vmem>>, %arg5: memref<32x1xf32, #tpu.memory_space<vmem>>, %arg6: memref<32x32xf32, #tpu.memory_space<vmem>>, %arg7: memref<32x1xf32, #tpu.memory_space<vmem>>, %arg8: memref<32x1xf32, #tpu.memory_space<vmem>>, %arg9: memref<1x1xf32, #tpu.memory_space<smem>>, %arg10: memref<1x128xf32, #tpu.memory_space<vmem>>) attributes {dimension_semantics = [#tpu.dimension_semantics<parallel>], iteration_bounds = array<i64: 1>, scalar_prefetch = 0 : i64, scratch_operands = 0 : i64, tpu.core_type = #tpu.core_type<tc>, window_params = [{transform_indices = @transform_0, window_bounds = array<i64: 128, 16>}, {pipeline_mode = #tpu.pipeline_mode<synchronous>, transform_indices = @transform_1, window_bounds = array<i64: 32, 16>}, {pipeline_mode = #tpu.pipeline_mode<synchronous>, transform_indices = @transform_2, window_bounds = array<i64: 32, 1>}, {pipeline_mode = #tpu.pipeline_mode<synchronous>, transform_indices = @transform_3, window_bounds = array<i64: 32, 32>}, {pipeline_mode = #tpu.pipeline_mode<synchronous>, transform_indices = @transform_4, window_bounds = array<i64: 32, 1>}, {pipeline_mode = #tpu.pipeline_mode<synchronous>, transform_indices = @transform_5, window_bounds = array<i64: 32, 32>}, {pipeline_mode = #tpu.pipeline_mode<synchronous>, transform_indices = @transform_6, window_bounds = array<i64: 32, 1>}, {pipeline_mode = #tpu.pipeline_mode<synchronous>, transform_indices = @transform_7, window_bounds = array<i64: 32, 1>}, {transform_indices = @transform_8, window_bounds = array<i64: 1, 1>}, {transform_indices = @transform_9, window_bounds = array<i64: 1, 128>}]} {
    %c0 = arith.constant 0 : index
    %c0_0 = arith.constant 0 : index
    %0 = vector.load %arg1[%c0, %c0_0] : memref<128x16xf32, #tpu.memory_space<vmem>>, vector<128x16xf32>
    %c0_1 = arith.constant 0 : index
    %c0_2 = arith.constant 0 : index
    %1 = vector.load %arg2[%c0_1, %c0_2] : memref<32x16xf32, #tpu.memory_space<vmem>>, vector<32x16xf32>
    %cst = arith.constant dense<0.000000e+00> : vector<32x128xf32>
    %2 = tpu.matmul %1, %0, %cst {dimension_numbers = #tpu.dot_dimension_numbers<[1], [1], [0], [0], [0, 0, 1, 0], [], []>} : vector<32x16xf32>, vector<128x16xf32>, vector<32x128xf32> -> vector<32x128xf32>
    %c0_3 = arith.constant 0 : index
    %c0_4 = arith.constant 0 : index
    %3 = vector.load %arg3[%c0_3, %c0_4] : memref<32x1xf32, #tpu.memory_space<vmem>>, vector<32x1xf32>
    %4 = vector.broadcast %3 : vector<32x1xf32> to vector<32x128xf32>
    %5 = arith.addf %2, %4 : vector<32x128xf32>
    %6 = math.tanh %5 : vector<32x128xf32>
    %c0_5 = arith.constant 0 : index
    %c0_6 = arith.constant 0 : index
    %7 = vector.load %arg4[%c0_5, %c0_6] : memref<32x32xf32, #tpu.memory_space<vmem>>, vector<32x32xf32>
    %cst_7 = arith.constant dense<0.000000e+00> : vector<32x128xf32>
    %8 = tpu.matmul %7, %6, %cst_7 {dimension_numbers = #tpu.dot_dimension_numbers<[1], [0], [0], [1], [0, 0, 1, 1], [], []>} : vector<32x32xf32>, vector<32x128xf32>, vector<32x128xf32> -> vector<32x128xf32>
    %c0_8 = arith.constant 0 : index
    %c0_9 = arith.constant 0 : index
    %9 = vector.load %arg5[%c0_8, %c0_9] : memref<32x1xf32, #tpu.memory_space<vmem>>, vector<32x1xf32>
    %10 = vector.broadcast %9 : vector<32x1xf32> to vector<32x128xf32>
    %11 = arith.addf %8, %10 : vector<32x128xf32>
    %12 = math.tanh %11 : vector<32x128xf32>
    %c0_10 = arith.constant 0 : index
    %c0_11 = arith.constant 0 : index
    %13 = vector.load %arg6[%c0_10, %c0_11] : memref<32x32xf32, #tpu.memory_space<vmem>>, vector<32x32xf32>
    %cst_12 = arith.constant dense<0.000000e+00> : vector<32x128xf32>
    %14 = tpu.matmul %13, %12, %cst_12 {dimension_numbers = #tpu.dot_dimension_numbers<[1], [0], [0], [1], [0, 0, 1, 1], [], []>} : vector<32x32xf32>, vector<32x128xf32>, vector<32x128xf32> -> vector<32x128xf32>
    %c0_13 = arith.constant 0 : index
    %c0_14 = arith.constant 0 : index
    %15 = vector.load %arg7[%c0_13, %c0_14] : memref<32x1xf32, #tpu.memory_space<vmem>>, vector<32x1xf32>
    %16 = vector.broadcast %15 : vector<32x1xf32> to vector<32x128xf32>
    %17 = arith.addf %14, %16 : vector<32x128xf32>
    %18 = math.tanh %17 : vector<32x128xf32>
    %c0_15 = arith.constant 0 : index
    %c0_16 = arith.constant 0 : index
    %19 = vector.load %arg8[%c0_15, %c0_16] : memref<32x1xf32, #tpu.memory_space<vmem>>, vector<32x1xf32>
    %20 = vector.broadcast %19 : vector<32x1xf32> to vector<32x128xf32>
    %21 = arith.mulf %18, %20 : vector<32x128xf32>
    %cst_17 = arith.constant dense<0.000000e+00> : vector<128xf32>
    %22 = vector.multi_reduction <add>, %21, %cst_17 [0] : vector<32x128xf32> to vector<128xf32>
    %23 = vector.shape_cast %22 : vector<128xf32> to vector<1x128xf32>
    %c0_18 = arith.constant 0 : index
    %c0_19 = arith.constant 0 : index
    %24 = memref.load %arg9[%c0_18, %c0_19] : memref<1x1xf32, #tpu.memory_space<smem>>
    %25 = vector.broadcast %24 : f32 to vector<1x128xf32>
    %26 = arith.addf %23, %25 : vector<1x128xf32>
    %c0_20 = arith.constant 0 : index
    %c0_21 = arith.constant 0 : index
    %27 = vector.load %arg10[%c0_20, %c0_21] : memref<1x128xf32, #tpu.memory_space<vmem>>, vector<1x128xf32>
    tpu.vector_store %arg10[%c0_20, %c0_21], %26 {strides = array<i32>} : memref<1x128xf32, #tpu.memory_space<vmem>>, vector<1x128xf32>,
    return
  }
  func.func @transform_0(%arg0: i32) -> (i32, i32) {
    %c0_i32 = arith.constant 0 : i32
    %c0_i32_0 = arith.constant 0 : i32
    return %arg0, %c0_i32 : i32, i32
  }
  func.func @transform_1(%arg0: i32) -> (i32, i32) {
    %c0_i32 = arith.constant 0 : i32
    %c0_i32_0 = arith.constant 0 : i32
    %c0_i32_1 = arith.constant 0 : i32
    return %c0_i32, %c0_i32_0 : i32, i32
  }
  func.func @transform_2(%arg0: i32) -> (i32, i32) {
    %c0_i32 = arith.constant 0 : i32
    %c0_i32_0 = arith.constant 0 : i32
    %c0_i32_1 = arith.constant 0 : i32
    return %c0_i32, %c0_i32_0 : i32, i32
  }
  func.func @transform_3(%arg0: i32) -> (i32, i32) {
    %c0_i32 = arith.constant 0 : i32
    %c0_i32_0 = arith.constant 0 : i32
    %c0_i32_1 = arith.constant 0 : i32
    return %c0_i32, %c0_i32_0 : i32, i32
  }
  func.func @transform_4(%arg0: i32) -> (i32, i32) {
    %c0_i32 = arith.constant 0 : i32
    %c0_i32_0 = arith.constant 0 : i32
    %c0_i32_1 = arith.constant 0 : i32
    return %c0_i32, %c0_i32_0 : i32, i32
  }
  func.func @transform_5(%arg0: i32) -> (i32, i32) {
    %c0_i32 = arith.constant 0 : i32
    %c0_i32_0 = arith.constant 0 : i32
    %c0_i32_1 = arith.constant 0 : i32
    return %c0_i32, %c0_i32_0 : i32, i32
  }
  func.func @transform_6(%arg0: i32) -> (i32, i32) {
    %c0_i32 = arith.constant 0 : i32
    %c0_i32_0 = arith.constant 0 : i32
    %c0_i32_1 = arith.constant 0 : i32
    return %c0_i32, %c0_i32_0 : i32, i32
  }
  func.func @transform_7(%arg0: i32) -> (i32, i32) {
    %c0_i32 = arith.constant 0 : i32
    %c0_i32_0 = arith.constant 0 : i32
    %c0_i32_1 = arith.constant 0 : i32
    return %c0_i32, %c0_i32_0 : i32, i32
  }
  func.func @transform_8(%arg0: i32) -> (i32, i32) {
    %c0_i32 = arith.constant 0 : i32
    %c0_i32_0 = arith.constant 0 : i32
    %c0_i32_1 = arith.constant 0 : i32
    return %c0_i32, %c0_i32_0 : i32, i32
  }
  func.func @transform_9(%arg0: i32) -> (i32, i32) {
    %c0_i32 = arith.constant 0 : i32
    %c0_i32_0 = arith.constant 0 : i32
    return %c0_i32, %arg0 : i32, i32
  }
}

</mosaic_0001>

<llo_original>
// kernel: terminal_network_forward.1
$region0: #{terminal_network_forward.1}
  #allocation0 [shape = 'u32[]', space=smem, size = 0x4, offset = 0x4, fixed_abs, tag = 'smem constant byte address 0x4 - core index']
  #allocation1 [shape = 'u32[144,128]{1,0:T(1,128)}', space=vmem, size = 0x12000, scoped, tag = 'internal scratch']
  #allocation2 [shape = 'f32[1,1]{1,0:T(1,128)S(6)}', space=smem, size = 0x200, scoped, tag = 'scoped memory for terminal_network_forward.1']
  %s0 = inlined_call_operand.vmem [shape: f32[128,16], index: 0, kind: input, shape index: {}]
  %s1 = inlined_call_operand.vmem [shape: f32[32,16], index: 1, kind: input, shape index: {}]
  %s2 = inlined_call_operand.vmem [shape: f32[32,1], index: 2, kind: input, shape index: {}]
  %s3 = inlined_call_operand.vmem [shape: f32[32,32], index: 3, kind: input, shape index: {}]
  %s4 = inlined_call_operand.vmem [shape: f32[32,1], index: 4, kind: input, shape index: {}]
  %s5 = inlined_call_operand.vmem [shape: f32[32,32], index: 5, kind: input, shape index: {}]
  %s6 = inlined_call_operand.vmem [shape: f32[32,1], index: 6, kind: input, shape index: {}]
  %s7 = inlined_call_operand.vmem [shape: f32[32,1], index: 7, kind: input, shape index: {}]
  %s8 = inlined_call_operand.<no memory space> [shape: f32[1,1], index: 8, kind: input, shape index: {}]
  %s9 = inlined_call_operand.vmem [shape: f32[1,128], index: 9, kind: output, shape index: {}]
  %s10 = sld [smem:[#allocation0]]
  $region46: #{terminal_network_forward.1} parent=0
    _
  %s12 = ssub.s32 1, %s10
  %s13 = scalar_select 0, %s12, %s10
  %14 = sst [smem:[#allocation2]] %s8
  // Predicated region
  $region2: #{terminal_network_forward.1} parent=0 // pred_check
    _
  $region3: #{terminal_network_forward.1} parent=0 // pred_check_branch
    %16 = sbr.rel (0) target = $region5
  $region4: #{terminal_network_forward.1} parent=0 // pred_region
    _
  $region5: #{terminal_network_forward.1} parent=0 // pred_fallthru
    _
  // Predicated region
  $region6: #{terminal_network_forward.1} parent=0 // pred_check
    _
  $region7: #{terminal_network_forward.1} parent=0 // pred_check_branch
    %18 = sbr.rel (0) target = $region9
  $region8: #{terminal_network_forward.1} parent=0 // pred_region
    _
  $region9: #{terminal_network_forward.1} parent=0 // pred_fallthru
    _
  // Predicated region
  $region10: #{terminal_network_forward.1} parent=0 // pred_check
    _
  $region11: #{terminal_network_forward.1} parent=0 // pred_check_branch
    %20 = sbr.rel (0) target = $region13
  $region12: #{terminal_network_forward.1} parent=0 // pred_region
    _
  $region13: #{terminal_network_forward.1} parent=0 // pred_fallthru
    _
  // Predicated region
  $region14: #{terminal_network_forward.1} parent=0 // pred_check
    _
  $region15: #{terminal_network_forward.1} parent=0 // pred_check_branch
    %22 = sbr.rel (0) target = $region17
  $region16: #{terminal_network_forward.1} parent=0 // pred_region
    _
  $region17: #{terminal_network_forward.1} parent=0 // pred_fallthru
    _
  // Predicated region
  $region18: #{terminal_network_forward.1} parent=0 // pred_check
    _
  $region19: #{terminal_network_forward.1} parent=0 // pred_check_branch
    %24 = sbr.rel (0) target = $region21
  $region20: #{terminal_network_forward.1} parent=0 // pred_region
    _
  $region21: #{terminal_network_forward.1} parent=0 // pred_fallthru
    _
  // Predicated region
  $region22: #{terminal_network_forward.1} parent=0 // pred_check
    _
  $region23: #{terminal_network_forward.1} parent=0 // pred_check_branch
    %26 = sbr.rel (0) target = $region25
  $region24: #{terminal_network_forward.1} parent=0 // pred_region
    _
  $region25: #{terminal_network_forward.1} parent=0 // pred_fallthru
    _
  // Predicated region
  $region26: #{terminal_network_forward.1} parent=0 // pred_check
    _
  $region27: #{terminal_network_forward.1} parent=0 // pred_check_branch
    %28 = sbr.rel (0) target = $region29
  $region28: #{terminal_network_forward.1} parent=0 // pred_region
    _
  $region29: #{terminal_network_forward.1} parent=0 // pred_fallthru
    _
  // Predicated region
  $region30: #{terminal_network_forward.1} parent=0 // pred_check
    _
  $region31: #{terminal_network_forward.1} parent=0 // pred_check_branch
    %30 = sbr.rel (0) target = $region33
  $region32: #{terminal_network_forward.1} parent=0 // pred_region
    _
  $region33: #{terminal_network_forward.1} parent=0 // pred_fallthru
    _
  // Predicated region
  $region34: #{terminal_network_forward.1} parent=0 // pred_check
    _
  $region35: #{terminal_network_forward.1} parent=0 // pred_check_branch
    %32 = sbr.rel (0) target = $region37
  $region36: #{terminal_network_forward.1} parent=0 // pred_region
    _
  $region37: #{terminal_network_forward.1} parent=0 // pred_fallthru
    _
  %v33 = vld [vmem:[%s0] sm:$0xff]
  %v34 = vld [vmem:[%s0 + $0x8] sm:$0xff]
  %v35 = vld [vmem:[%s0 + $0x10] sm:$0xff]
  %v36 = vld [vmem:[%s0 + $0x18] sm:$0xff]
  %v37 = vld [vmem:[%s0 + $0x20] sm:$0xff]
  %v38 = vld [vmem:[%s0 + $0x28] sm:$0xff]
  %v39 = vld [vmem:[%s0 + $0x30] sm:$0xff]
  %v40 = vld [vmem:[%s0 + $0x38] sm:$0xff]
  %v41 = vld [vmem:[%s0 + $0x40] sm:$0xff]
  %v42 = vld [vmem:[%s0 + $0x48] sm:$0xff]
  %v43 = vld [vmem:[%s0 + $0x50] sm:$0xff]
  %v44 = vld [vmem:[%s0 + $0x58] sm:$0xff]
  %v45 = vld [vmem:[%s0 + $0x60] sm:$0xff]
  %v46 = vld [vmem:[%s0 + $0x68] sm:$0xff]
  %v47 = vld [vmem:[%s0 + $0x70] sm:$0xff]
  %v48 = vld [vmem:[%s0 + $0x78] sm:$0xff]
  %v49 = vld [vmem:[%s1] sm:$0xff]
  %v50 = vld [vmem:[%s1 + $0x8] sm:$0xff]
  %v51 = vld [vmem:[%s1 + $0x10] sm:$0xff]
  %v52 = vld [vmem:[%s1 + $0x18] sm:$0xff]
  %v53 = vld [vmem:[%s2] sm:$0xff]
  %v54 = vld [vmem:[%s2 + $0x8] sm:$0xff]
  %v55 = vld [vmem:[%s2 + $0x10] sm:$0xff]
  %v56 = vld [vmem:[%s2 + $0x18] sm:$0xff]
  %58 = vset.pattern.permute.xlu0 0
  %59 = vperm.xlu0 %58, %v53
  %v60 = vpop.permute.xlu0 %59
  %63 = vset.pattern.permute.xlu0 0
  %64 = vperm.xlu0 %63, %v54
  %v65 = vpop.permute.xlu0 %64
  %68 = vset.pattern.permute.xlu0 0
  %69 = vperm.xlu0 %68, %v55
  %v70 = vpop.permute.xlu0 %69
  %73 = vset.pattern.permute.xlu0 0
  %74 = vperm.xlu0 %73, %v56
  %v75 = vpop.permute.xlu0 %74
  %vm77 = vcmask 130048
  %v79 = vsel %vm77, %v49, 0
  %v82 = vsel %vm77, %v50, 0
  %v85 = vsel %vm77, %v51, 0
  %v88 = vsel %vm77, %v52, 0
  %v91 = vsel %vm77, %v33, 0
  %v94 = vsel %vm77, %v34, 0
  %v97 = vsel %vm77, %v35, 0
  %v100 = vsel %vm77, %v36, 0
  %v103 = vsel %vm77, %v37, 0
  %v106 = vsel %vm77, %v38, 0
  %v109 = vsel %vm77, %v39, 0
  %v112 = vsel %vm77, %v40, 0
  %v115 = vsel %vm77, %v41, 0
  %v118 = vsel %vm77, %v42, 0
  %v121 = vsel %vm77, %v43, 0
  %v124 = vsel %vm77, %v44, 0
  %v127 = vsel %vm77, %v45, 0
  %v130 = vsel %vm77, %v46, 0
  %v133 = vsel %vm77, %v47, 0
  %v136 = vsel %vm77, %v48, 0
  %138 = vmatprep.subr.mxu0 0.0
  %139 = vmatpush1.xpose.msra.mxu0 %v91
  %140 = vmatprep.subr.mxu0 0.0
  %141 = vmatpush1.xpose.msra.mxu0 %v94
  %142 = vmatprep.subr.mxu0 0.0
  %143 = vmatpush1.xpose.msra.mxu0 %v97
  %144 = vmatprep.subr.mxu0 0.0
  %145 = vmatpush1.xpose.msra.mxu0 %v100
  %146 = vmatprep.subr.mxu0 0.0
  %147 = vmatpush1.xpose.msra.mxu0 %v103
  %148 = vmatprep.subr.mxu0 0.0
  %149 = vmatpush1.xpose.msra.mxu0 %v106
  %150 = vmatprep.subr.mxu0 0.0
  %151 = vmatpush1.xpose.msra.mxu0 %v109
  %152 = vmatprep.subr.mxu0 0.0
  %153 = vmatpush1.xpose.msra.mxu0 %v112
  %154 = vmatprep.subr.mxu0 0.0
  %155 = vmatpush1.xpose.msra.mxu0 %v115
  %156 = vmatprep.subr.mxu0 0.0
  %157 = vmatpush1.xpose.msra.mxu0 %v118
  %158 = vmatprep.subr.mxu0 0.0
  %159 = vmatpush1.xpose.msra.mxu0 %v121
  %160 = vmatprep.subr.mxu0 0.0
  %161 = vmatpush1.xpose.msra.mxu0 %v124
  %162 = vmatprep.subr.mxu0 0.0
  %163 = vmatpush1.xpose.msra.mxu0 %v127
  %164 = vmatprep.subr.mxu0 0.0
  %165 = vmatpush1.xpose.msra.mxu0 %v130
  %166 = vmatprep.subr.mxu0 0.0
  %167 = vmatpush1.xpose.msra.mxu0 %v133
  %168 = vmatprep.subr.mxu0 0.0
  %169 = vmatpush1.xpose.msra.mxu0 %v136
  %170 = vmatprep.subr.mxu0 0.0
  %171 = vmatpush1.xpose.msra.mxu0 0.0
  %172 = vmatprep.subr.mxu0 0.0
  %173 = vmatpush1.xpose.msra.mxu0 0.0
  %174 = vmatprep.subr.mxu0 0.0
  %175 = vmatpush1.xpose.msra.mxu0 0.0
  %176 = vmatprep.subr.mxu0 0.0
  %177 = vmatpush1.xpose.msra.mxu0 0.0
  %178 = vmatprep.subr.mxu0 0.0
  %179 = vmatpush1.xpose.msra.mxu0 0.0
  %180 = vmatprep.subr.mxu0 0.0
  %181 = vmatpush1.xpose.msra.mxu0 0.0
  %182 = vmatprep.subr.mxu0 0.0
  %183 = vmatpush1.xpose.msra.mxu0 0.0
  %184 = vmatprep.subr.mxu0 0.0
  %185 = vmatpush1.xpose.msra.mxu0 0.0
  %186 = vmatprep.subr.mxu0 0.0
  %187 = vmatpush1.xpose.msra.mxu0 0.0
  %188 = vmatprep.subr.mxu0 0.0
  %189 = vmatpush1.xpose.msra.mxu0 0.0
  %190 = vmatprep.subr.mxu0 0.0
  %191 = vmatpush1.xpose.msra.mxu0 0.0
  %192 = vmatprep.subr.mxu0 0.0
  %193 = vmatpush1.xpose.msra.mxu0 0.0
  %194 = vmatprep.subr.mxu0 0.0
  %195 = vmatpush1.xpose.msra.mxu0 0.0
  %196 = vmatprep.subr.mxu0 0.0
  %197 = vmatpush1.xpose.msra.mxu0 0.0
  %198 = vmatprep.subr.mxu0 0.0
  %199 = vmatpush1.xpose.msra.mxu0 0.0
  %200 = vmatprep.subr.mxu0 0.0
  %201 = vmatpush1.xpose.msra.mxu0 0.0
  %202 = vmatprep.mubr.f32.mxu0 0.0
  %203 = vmatmul.mubr.f32.gmra.mrb[0].mxu0 %v79
  %v204 = vpop.f32.mrb[0].mxu0
  %v205 = vadd.f32 %v60, %v204
  %v206 = vpop.f32.mrb[0].mxu0
  %207 = vmatprep.mubr.f32.mxu0 0.0
  %208 = vmatmul.mubr.f32.gmra.mrb[0].mxu0 %v82
  %v209 = vpop.f32.mrb[0].mxu0
  %v210 = vadd.f32 %v65, %v209
  %v211 = vpop.f32.mrb[0].mxu0
  %212 = vmatprep.mubr.f32.mxu0 0.0
  %213 = vmatmul.mubr.f32.gmra.mrb[0].mxu0 %v85
  %v214 = vpop.f32.mrb[0].mxu0
  %v215 = vadd.f32 %v70, %v214
  %v216 = vpop.f32.mrb[0].mxu0
  %217 = vmatprep.mubr.f32.mxu0 0.0
  %218 = vmatmul.mubr.f32.gmra.mrb[0].mxu0 %v88
  %v219 = vpop.f32.mrb[0].mxu0
  %v220 = vadd.f32 %v75, %v219
  %v221 = vpop.f32.mrb[0].mxu0
  %222 = vdwg.mxu0
  %v223 = vtanh.pop %v205
  %v224 = vtanh.pop %v210
  %v225 = vtanh.pop %v215
  %v226 = vtanh.pop %v220
  %v227 = vld [vmem:[%s3] sm:$0xff]
  %v228 = vld [vmem:[%s3 + $0x8] sm:$0xff]
  %v229 = vld [vmem:[%s3 + $0x10] sm:$0xff]
  %v230 = vld [vmem:[%s3 + $0x18] sm:$0xff]
  %v231 = vld [vmem:[%s4] sm:$0xff]
  %v232 = vld [vmem:[%s4 + $0x8] sm:$0xff]
  %v233 = vld [vmem:[%s4 + $0x10] sm:$0xff]
  %v234 = vld [vmem:[%s4 + $0x18] sm:$0xff]
  %236 = vset.pattern.permute.xlu0 0
  %237 = vperm.xlu0 %236, %v231
  %v238 = vpop.permute.xlu0 %237
  %241 = vset.pattern.permute.xlu0 0
  %242 = vperm.xlu0 %241, %v232
  %v243 = vpop.permute.xlu0 %242
  %246 = vset.pattern.permute.xlu0 0
  %247 = vperm.xlu0 %246, %v233
  %v248 = vpop.permute.xlu0 %247
  %251 = vset.pattern.permute.xlu0 0
  %252 = vperm.xlu0 %251, %v234
  %v253 = vpop.permute.xlu0 %252
  %vm255 = vcmask 261120
  %v257 = vsel %vm255, %v227, 0
  %v260 = vsel %vm255, %v228, 0
  %v263 = vsel %vm255, %v229, 0
  %v266 = vsel %vm255, %v230, 0
  %268 = vmatprep.subr.mxu0 0.0
  %269 = vmatpush1.msra.mxu0 %v223
  %270 = vmatprep.subr.mxu0 0.0
  %271 = vmatpush1.msra.mxu0 %v224
  %272 = vmatprep.subr.mxu0 0.0
  %273 = vmatpush1.msra.mxu0 %v225
  %274 = vmatprep.subr.mxu0 0.0
  %275 = vmatpush1.msra.mxu0 %v226
  %276 = vmatprep.subr.mxu0 0.0
  %277 = vmatpush1.msra.mxu0 0.0
  %278 = vmatprep.subr.mxu0 0.0
  %279 = vmatpush1.msra.mxu0 0.0
  %280 = vmatprep.subr.mxu0 0.0
  %281 = vmatpush1.msra.mxu0 0.0
  %282 = vmatprep.subr.mxu0 0.0
  %283 = vmatpush1.msra.mxu0 0.0
  %284 = vmatprep.subr.mxu0 0.0
  %285 = vmatpush1.msra.mxu0 0.0
  %286 = vmatprep.subr.mxu0 0.0
  %287 = vmatpush1.msra.mxu0 0.0
  %288 = vmatprep.subr.mxu0 0.0
  %289 = vmatpush1.msra.mxu0 0.0
  %290 = vmatprep.subr.mxu0 0.0
  %291 = vmatpush1.msra.mxu0 0.0
  %292 = vmatprep.subr.mxu0 0.0
  %293 = vmatpush1.msra.mxu0 0.0
  %294 = vmatprep.subr.mxu0 0.0
  %295 = vmatpush1.msra.mxu0 0.0
  %296 = vmatprep.subr.mxu0 0.0
  %297 = vmatpush1.msra.mxu0 0.0
  %298 = vmatprep.subr.mxu0 0.0
  %299 = vmatpush1.msra.mxu0 0.0
  %300 = vmatprep.subr.mxu0 0.0
  %301 = vmatpush1.msra.mxu0 0.0
  %302 = vmatprep.subr.mxu0 0.0
  %303 = vmatpush1.msra.mxu0 0.0
  %304 = vmatprep.subr.mxu0 0.0
  %305 = vmatpush1.msra.mxu0 0.0
  %306 = vmatprep.subr.mxu0 0.0
  %307 = vmatpush1.msra.mxu0 0.0
  %308 = vmatprep.subr.mxu0 0.0
  %309 = vmatpush1.msra.mxu0 0.0
  %310 = vmatprep.subr.mxu0 0.0
  %311 = vmatpush1.msra.mxu0 0.0
  %312 = vmatprep.subr.mxu0 0.0
  %313 = vmatpush1.msra.mxu0 0.0
  %314 = vmatprep.subr.mxu0 0.0
  %315 = vmatpush1.msra.mxu0 0.0
  %316 = vmatprep.subr.mxu0 0.0
  %317 = vmatpush1.msra.mxu0 0.0
  %318 = vmatprep.subr.mxu0 0.0
  %319 = vmatpush1.msra.mxu0 0.0
  %320 = vmatprep.subr.mxu0 0.0
  %321 = vmatpush1.msra.mxu0 0.0
  %322 = vmatprep.subr.mxu0 0.0
  %323 = vmatpush1.msra.mxu0 0.0
  %324 = vmatprep.subr.mxu0 0.0
  %325 = vmatpush1.msra.mxu0 0.0
  %326 = vmatprep.subr.mxu0 0.0
  %327 = vmatpush1.msra.mxu0 0.0
  %328 = vmatprep.subr.mxu0 0.0
  %329 = vmatpush1.msra.mxu0 0.0
  %330 = vmatprep.subr.mxu0 0.0
  %331 = vmatpush1.msra.mxu0 0.0
  %332 = vmatprep.mubr.f32.mxu0 0.0
  %333 = vmatmul.mubr.f32.gmra.mrb[0].mxu0 %v257
  %v334 = vpop.f32.mrb[0].mxu0
  %v335 = vadd.f32 %v238, %v334
  %v336 = vpop.f32.mrb[0].mxu0
  %337 = vmatprep.mubr.f32.mxu0 0.0
  %338 = vmatmul.mubr.f32.gmra.mrb[0].mxu0 %v260
  %v339 = vpop.f32.mrb[0].mxu0
  %v340 = vadd.f32 %v243, %v339
  %v341 = vpop.f32.mrb[0].mxu0
  %342 = vmatprep.mubr.f32.mxu0 0.0
  %343 = vmatmul.mubr.f32.gmra.mrb[0].mxu0 %v263
  %v344 = vpop.f32.mrb[0].mxu0
  %v345 = vadd.f32 %v248, %v344
  %v346 = vpop.f32.mrb[0].mxu0
  %347 = vmatprep.mubr.f32.mxu0 0.0
  %348 = vmatmul.mubr.f32.gmra.mrb[0].mxu0 %v266
  %v349 = vpop.f32.mrb[0].mxu0
  %v350 = vadd.f32 %v253, %v349
  %v351 = vpop.f32.mrb[0].mxu0
  %352 = vdwg.mxu0
  %v353 = vtanh.pop %v335
  %v354 = vtanh.pop %v340
  %v355 = vtanh.pop %v345
  %v356 = vtanh.pop %v350
  %v357 = vld [vmem:[%s5] sm:$0xff]
  %v358 = vld [vmem:[%s5 + $0x8] sm:$0xff]
  %v359 = vld [vmem:[%s5 + $0x10] sm:$0xff]
  %v360 = vld [vmem:[%s5 + $0x18] sm:$0xff]
  %v361 = vld [vmem:[%s6] sm:$0xff]
  %v362 = vld [vmem:[%s6 + $0x8] sm:$0xff]
  %v363 = vld [vmem:[%s6 + $0x10] sm:$0xff]
  %v364 = vld [vmem:[%s6 + $0x18] sm:$0xff]
  %366 = vset.pattern.permute.xlu0 0
  %367 = vperm.xlu0 %366, %v361
  %v368 = vpop.permute.xlu0 %367
  %371 = vset.pattern.permute.xlu0 0
  %372 = vperm.xlu0 %371, %v362
  %v373 = vpop.permute.xlu0 %372
  %376 = vset.pattern.permute.xlu0 0
  %377 = vperm.xlu0 %376, %v363
  %v378 = vpop.permute.xlu0 %377
  %381 = vset.pattern.permute.xlu0 0
  %382 = vperm.xlu0 %381, %v364
  %v383 = vpop.permute.xlu0 %382
  %v386 = vsel %vm255, %v357, 0
  %v389 = vsel %vm255, %v358, 0
  %v392 = vsel %vm255, %v359, 0
  %v395 = vsel %vm255, %v360, 0
  %397 = vmatprep.subr.mxu0 0.0
  %398 = vmatpush1.msra.mxu0 %v353
  %399 = vmatprep.subr.mxu0 0.0
  %400 = vmatpush1.msra.mxu0 %v354
  %401 = vmatprep.subr.mxu0 0.0
  %402 = vmatpush1.msra.mxu0 %v355
  %403 = vmatprep.subr.mxu0 0.0
  %404 = vmatpush1.msra.mxu0 %v356
  %405 = vmatprep.subr.mxu0 0.0
  %406 = vmatpush1.msra.mxu0 0.0
  %407 = vmatprep.subr.mxu0 0.0
  %408 = vmatpush1.msra.mxu0 0.0
  %409 = vmatprep.subr.mxu0 0.0
  %410 = vmatpush1.msra.mxu0 0.0
  %411 = vmatprep.subr.mxu0 0.0
  %412 = vmatpush1.msra.mxu0 0.0
  %413 = vmatprep.subr.mxu0 0.0
  %414 = vmatpush1.msra.mxu0 0.0
  %415 = vmatprep.subr.mxu0 0.0
  %416 = vmatpush1.msra.mxu0 0.0
  %417 = vmatprep.subr.mxu0 0.0
  %418 = vmatpush1.msra.mxu0 0.0
  %419 = vmatprep.subr.mxu0 0.0
  %420 = vmatpush1.msra.mxu0 0.0
  %421 = vmatprep.subr.mxu0 0.0
  %422 = vmatpush1.msra.mxu0 0.0
  %423 = vmatprep.subr.mxu0 0.0
  %424 = vmatpush1.msra.mxu0 0.0
  %425 = vmatprep.subr.mxu0 0.0
  %426 = vmatpush1.msra.mxu0 0.0
  %427 = vmatprep.subr.mxu0 0.0
  %428 = vmatpush1.msra.mxu0 0.0
  %429 = vmatprep.subr.mxu0 0.0
  %430 = vmatpush1.msra.mxu0 0.0
  %431 = vmatprep.subr.mxu0 0.0
  %432 = vmatpush1.msra.mxu0 0.0
  %433 = vmatprep.subr.mxu0 0.0
  %434 = vmatpush1.msra.mxu0 0.0
  %435 = vmatprep.subr.mxu0 0.0
  %436 = vmatpush1.msra.mxu0 0.0
  %437 = vmatprep.subr.mxu0 0.0
  %438 = vmatpush1.msra.mxu0 0.0
  %439 = vmatprep.subr.mxu0 0.0
  %440 = vmatpush1.msra.mxu0 0.0
  %441 = vmatprep.subr.mxu0 0.0
  %442 = vmatpush1.msra.mxu0 0.0
  %443 = vmatprep.subr.mxu0 0.0
  %444 = vmatpush1.msra.mxu0 0.0
  %445 = vmatprep.subr.mxu0 0.0
  %446 = vmatpush1.msra.mxu0 0.0
  %447 = vmatprep.subr.mxu0 0.0
  %448 = vmatpush1.msra.mxu0 0.0
  %449 = vmatprep.subr.mxu0 0.0
  %450 = vmatpush1.msra.mxu0 0.0
  %451 = vmatprep.subr.mxu0 0.0
  %452 = vmatpush1.msra.mxu0 0.0
  %453 = vmatprep.subr.mxu0 0.0
  %454 = vmatpush1.msra.mxu0 0.0
  %455 = vmatprep.subr.mxu0 0.0
  %456 = vmatpush1.msra.mxu0 0.0
  %457 = vmatprep.subr.mxu0 0.0
  %458 = vmatpush1.msra.mxu0 0.0
  %459 = vmatprep.subr.mxu0 0.0
  %460 = vmatpush1.msra.mxu0 0.0
  %461 = vmatprep.mubr.f32.mxu0 0.0
  %462 = vmatmul.mubr.f32.gmra.mrb[0].mxu0 %v386
  %v463 = vpop.f32.mrb[0].mxu0
  %v464 = vadd.f32 %v368, %v463
  %v465 = vpop.f32.mrb[0].mxu0
  %466 = vmatprep.mubr.f32.mxu0 0.0
  %467 = vmatmul.mubr.f32.gmra.mrb[0].mxu0 %v389
  %v468 = vpop.f32.mrb[0].mxu0
  %v469 = vadd.f32 %v373, %v468
  %v470 = vpop.f32.mrb[0].mxu0
  %471 = vmatprep.mubr.f32.mxu0 0.0
  %472 = vmatmul.mubr.f32.gmra.mrb[0].mxu0 %v392
  %v473 = vpop.f32.mrb[0].mxu0
  %v474 = vadd.f32 %v378, %v473
  %v475 = vpop.f32.mrb[0].mxu0
  %476 = vmatprep.mubr.f32.mxu0 0.0
  %477 = vmatmul.mubr.f32.gmra.mrb[0].mxu0 %v395
  %v478 = vpop.f32.mrb[0].mxu0
  %v479 = vadd.f32 %v383, %v478
  %v480 = vpop.f32.mrb[0].mxu0
  %481 = vdwg.mxu0
  %v482 = vtanh.pop %v464
  %v483 = vtanh.pop %v469
  %v484 = vtanh.pop %v474
  %v485 = vtanh.pop %v479
  %v486 = vld [vmem:[%s7] sm:$0xff]
  %v487 = vld [vmem:[%s7 + $0x8] sm:$0xff]
  %v488 = vld [vmem:[%s7 + $0x10] sm:$0xff]
  %v489 = vld [vmem:[%s7 + $0x18] sm:$0xff]
  %491 = vset.pattern.permute.xlu0 0
  %492 = vperm.xlu0 %491, %v486
  %v493 = vpop.permute.xlu0 %492
  %496 = vset.pattern.permute.xlu0 0
  %497 = vperm.xlu0 %496, %v487
  %v498 = vpop.permute.xlu0 %497
  %501 = vset.pattern.permute.xlu0 0
  %502 = vperm.xlu0 %501, %v488
  %v503 = vpop.permute.xlu0 %502
  %506 = vset.pattern.permute.xlu0 0
  %507 = vperm.xlu0 %506, %v489
  %v508 = vpop.permute.xlu0 %507
  %v510 = vmul.f32 %v482, %v493
  %v511 = vmul.f32 %v483, %v498
  %v512 = vmul.f32 %v484, %v503
  %v513 = vmul.f32 %v485, %v508
  %v514 = vadd.f32 %v510, %v511
  %v515 = vadd.f32 %v514, %v512
  %v516 = vadd.f32 %v515, %v513
  %v517 = vrot.slane %v516, 4
  %v518 = vadd.f32 %v516, %v517
  %v519 = vrot.slane %v518, 2
  %v520 = vadd.f32 %v518, %v519
  %v521 = vrot.slane %v520, 1
  %v522 = vadd.f32 %v520, %v521
  %s523 = sld [smem:[#allocation2]]
  %v524 = vstv %s523
  %v525 = vadd.f32 %v522, %v524
  %526 = vst [vmem:[%s9] sm:$0x1] %v525
  // Predicated region
  $region38: #{terminal_network_forward.1} parent=0 // pred_check
    _
  $region39: #{terminal_network_forward.1} parent=0 // pred_check_branch
    %528 = sbr.rel (0) target = $region41
  $region40: #{terminal_network_forward.1} parent=0 // pred_region
    _
  $region41: #{terminal_network_forward.1} parent=0 // pred_fallthru
    _
  // Predicated region
  $region42: #{terminal_network_forward.1} parent=0 // pred_check
    _
  $region43: #{terminal_network_forward.1} parent=0 // pred_check_branch
    %530 = sbr.rel (0) target = $region45
  $region44: #{terminal_network_forward.1} parent=0 // pred_region
    _
  $region45: #{terminal_network_forward.1} parent=0 // pred_fallthru
    _

</llo_original>
